<compile_context>
chip_gen: v5e
topology: v5e:2x2
jax: 0.10.0
libtpu: 0.0.40
codegen_flags: <defaults>
</compile_context>

<pallas_src>
import jax
import jax.numpy as jnp
from jax import lax
from jax.experimental import pallas as pl
from jax.experimental.pallas import tpu as pltpu


def _round_up(x, m):
    return ((x + m - 1) // m) * m


def _sigmoid(x):
    # sigmoid(x) == 0.5 * tanh(0.5 * x) + 0.5 : single EUP op per element.
    return 0.5 * jnp.tanh(0.5 * x) + 0.5


def ncdm_kernel(stu_ref, kd_ref, kp_ref,
                w1_ref, b1_ref, w2_ref, b2_ref, w3_ref, b3_ref,
                out_ref):
    # Elementwise "interaction" part (f32 on VPU/EUP). kp already carries
    # sigmoid(e_difficulty) folded in by the wrapper.
    stat = _sigmoid(stu_ref[...])                              # [TB, K]
    kdif = _sigmoid(kd_ref[...])                               # [TB, K]
    x = ((stat - kdif) * kp_ref[...]).astype(jnp.bfloat16)     # [TB, K] -> bf16 for MXU

    # prednet_full1 (PosLinear, |W| pre-applied in wrapper) + sigmoid.
    h1 = _sigmoid(
        jnp.dot(x, w1_ref[...], preferred_element_type=jnp.float32) + b1_ref[...])

    # prednet_full2 (PosLinear) + sigmoid.
    h2 = _sigmoid(
        jnp.dot(h1.astype(jnp.bfloat16), w2_ref[...],
                preferred_element_type=jnp.float32) + b2_ref[...])

    # prednet_full3 (out_features == 1): contract the LAST dims of both operands
    # (NT matmul, MXU-native layout) so the result is already a lane-dense
    # [1, TB] row — no [TB, L2] transpose materialized per tile.
    logits = lax.dot_general(
        w3_ref[...], h2.astype(jnp.bfloat16),
        dimension_numbers=(((1,), (1,)), ((), ())),
        preferred_element_type=jnp.float32)                    # [1, TB]
    out_ref[...] = _sigmoid(logits + b3_ref[0, 0])


def ncdm_forward(params, stu_id, input_exercise, input_knowledge_point):
    """Embedding gathers + weight prep in plain JAX, tiled hot path in Pallas."""
    f32, bf16 = jnp.float32, jnp.bfloat16

    B = stu_id.shape[0]
    K = params["student_emb"].shape[1]
    L1 = params["W1"].shape[0]          # 512
    L2 = params["W2"].shape[0]          # 256

    # Batch tile: for small batches use a single full tile; otherwise a multiple
    # of 128 (lane-dense (1, TB) output blocks) sized so the grid has >= ~4
    # steps, capped at 1024 (working set safe under v7x's 64 MiB VMEM).
    B8 = _round_up(B, 8)
    if B8 <= 512:
        TB = B8
    else:
        TB = min(1024, _round_up(pl.cdiv(B8, 4), 128))
    B_pad = _round_up(B, TB)
    G = B_pad // TB

    # Pad the 1-D index vectors (not the gathered [B, K] matrices): the gathers
    # then produce [B_pad, K] directly, avoiding an extra HBM read+write pass.
    pad_n = B_pad - B
    stu_id_p = jnp.pad(stu_id, (0, pad_n))                       # pad with valid idx 0
    exer_p = jnp.pad(input_exercise, (0, pad_n))

    stu_emb = params["student_emb"][stu_id_p].astype(f32)        # [B_pad, K]
    k_diff = params["k_difficulty"][exer_p].astype(f32)          # [B_pad, K]
    e_diff = jax.nn.sigmoid(params["e_difficulty"][exer_p].astype(f32))  # [B_pad, 1]

    # Fold sigmoid(e_difficulty) into the knowledge-point mask: removes one
    # (TB, 1) DMA stream and one sigmoid + broadcast-mul per tile. Padded rows
    # have kp == 0 -> x == 0 -> finite garbage that is sliced off below.
    kp = jnp.pad(input_knowledge_point.astype(f32),
                 ((0, pad_n), (0, 0))) * e_diff                  # [B_pad, K]

    # PosLinear transform pos(w) = 2*relu(-w)+w == |w|; weight-only work hoisted
    # out of the kernel. Matmul operands in bf16 (MXU), accumulate in f32.
    w1t = jnp.abs(params["W1"]).astype(bf16).T                   # [K, L1]
    w2t = jnp.abs(params["W2"]).astype(bf16).T                   # [L1, L2]
    w3r = jnp.abs(params["W3"]).astype(bf16).reshape(1, L2)      # [1, L2]
    b1 = params["b1"].astype(f32).reshape(1, L1)                 # [1, L1]
    b2 = params["b2"].astype(f32).reshape(1, L2)                 # [1, L2]
    b3 = params["b3"].astype(f32).reshape(1, 1)                  # [1, 1] scalar

    batch_blk = lambda i: (i, 0)
    resident = lambda i: (0, 0)          # weights/biases: same block every step

    out = pl.pallas_call(
        ncdm_kernel,
        out_shape=jax.ShapeDtypeStruct((1, B_pad), f32),
        grid=(G,),
        in_specs=[
            pl.BlockSpec((TB, K), batch_blk),    # stu_emb
            pl.BlockSpec((TB, K), batch_blk),    # k_difficulty
            pl.BlockSpec((TB, K), batch_blk),    # kp * sigmoid(e_difficulty)
            pl.BlockSpec((K, L1), resident),     # |W1|^T  (bf16, VMEM-resident)
            pl.BlockSpec((1, L1), resident),     # b1
            pl.BlockSpec((L1, L2), resident),    # |W2|^T
            pl.BlockSpec((1, L2), resident),     # b2
            pl.BlockSpec((1, L2), resident),     # |W3| row
            pl.BlockSpec((1, 1), resident,
                         memory_space=pltpu.MemorySpace.SMEM),   # b3 scalar
        ],
        out_specs=pl.BlockSpec((1, TB), lambda i: (0, i)),       # lane-dense output
        compiler_params=pltpu.CompilerParams(
            dimension_semantics=("parallel",),
            vmem_limit_bytes=48 * 1024 * 1024,
        ),
    )(stu_emb, k_diff, kp, w1t, b1, w2t, b2, w3r, b3)

    return out[0, :B]                    # view(-1)


def _xavier_normal(key, shape):
    # torch.nn.init.xavier_normal_: std = sqrt(2/(fan_in+fan_out)), shape = [out, in]
    fan_out, fan_in = shape
    std = (2.0 / (fan_in + fan_out)) ** 0.5
    return std * jax.random.normal(key, shape, dtype=jnp.float32)


def init_params(key, knowledge_n, exer_n, student_n):
    prednet_len1, prednet_len2 = 512, 256
    ks = jax.random.split(key, 9)
    params = {
        # Embedding weights also get xavier_normal_ in the module's init loop.
        "student_emb":  _xavier_normal(ks[0], (student_n, knowledge_n)),
        "k_difficulty": _xavier_normal(ks[1], (exer_n, knowledge_n)),
        "e_difficulty": _xavier_normal(ks[2], (exer_n, 1)),
        # Linear weights stored PyTorch-style [out_features, in_features].
        "W1": _xavier_normal(ks[3], (prednet_len1, knowledge_n)),
        "W2": _xavier_normal(ks[4], (prednet_len2, prednet_len1)),
        "W3": _xavier_normal(ks[5], (1, prednet_len2)),
        # nn.Linear bias default init: uniform(-1/sqrt(fan_in), 1/sqrt(fan_in)).
        "b1": jax.random.uniform(ks[6], (prednet_len1,), jnp.float32,
                                 -1.0 / knowledge_n ** 0.5, 1.0 / knowledge_n ** 0.5),
        "b2": jax.random.uniform(ks[7], (prednet_len2,), jnp.float32,
                                 -1.0 / prednet_len1 ** 0.5, 1.0 / prednet_len1 ** 0.5),
        "b3": jax.random.uniform(ks[8], (1,), jnp.float32,
                                 -1.0 / prednet_len2 ** 0.5, 1.0 / prednet_len2 ** 0.5),
    }
    return params


def _reference_forward(params, stu_id, input_exercise, input_knowledge_point):
    # Pure-JAX f32 reference (eval-mode PyTorch semantics) for a sanity check.
    stat = jax.nn.sigmoid(params["student_emb"][stu_id])
    kdif = jax.nn.sigmoid(params["k_difficulty"][input_exercise])
    edif = jax.nn.sigmoid(params["e_difficulty"][input_exercise])
    x = edif * (stat - kdif) * input_knowledge_point
    h1 = jax.nn.sigmoid(x @ jnp.abs(params["W1"]).T + params["b1"])
    h2 = jax.nn.sigmoid(h1 @ jnp.abs(params["W2"]).T + params["b2"])
    return jax.nn.sigmoid(h2 @ jnp.abs(params["W3"]).T + params["b3"]).reshape(-1)


if __name__ == "__main__":
    knowledge_n, exer_n, student_n = 32, 20, 10
    batch = 8

    key = jax.random.PRNGKey(0)
    pkey, k1, k2, k3 = jax.random.split(key, 4)

    params = init_params(pkey, knowledge_n, exer_n, student_n)

    stu_id = jax.random.randint(k1, (batch,), 0, student_n, dtype=jnp.int32)
    input_exercise = jax.random.randint(k2, (batch,), 0, exer_n, dtype=jnp.int32)
    input_knowledge_point = jax.random.bernoulli(
        k3, 0.5, (batch, knowledge_n)).astype(jnp.float32)

    fwd = jax.jit(ncdm_forward)
    out = fwd(params, stu_id, input_exercise, input_knowledge_point)
    out = jax.block_until_ready(out)

    ref = _reference_forward(params, stu_id, input_exercise, input_knowledge_point)
    assert out.shape == (batch,)
    assert bool(jnp.all(jnp.isfinite(out)))
    # bf16 MXU operands -> relaxed tolerance vs the f32 reference.
    assert bool(jnp.max(jnp.abs(out - ref)) < 2e-2), jnp.max(jnp.abs(out - ref))
    print("KERNEL_OK")
</pallas_src>

<mosaic_0001>
module attributes {stable_mosaic.version = 11 : i64} {
  func.func @ncdm_kernel(%arg0: i32, %arg1: memref<8x32xf32, #tpu.memory_space<vmem>>, %arg2: memref<8x32xf32, #tpu.memory_space<vmem>>, %arg3: memref<8x32xf32, #tpu.memory_space<vmem>>, %arg4: memref<32x512xbf16, #tpu.memory_space<vmem>>, %arg5: memref<1x512xf32, #tpu.memory_space<vmem>>, %arg6: memref<512x256xbf16, #tpu.memory_space<vmem>>, %arg7: memref<1x256xf32, #tpu.memory_space<vmem>>, %arg8: memref<1x256xbf16, #tpu.memory_space<vmem>>, %arg9: memref<1x1xf32, #tpu.memory_space<smem>>, %arg10: memref<1x8xf32, #tpu.memory_space<vmem>>) attributes {dimension_semantics = [#tpu.dimension_semantics<parallel>], iteration_bounds = array<i64: 1>, scalar_prefetch = 0 : i64, scratch_operands = 0 : i64, tpu.core_type = #tpu.core_type<tc>, window_params = [{transform_indices = @transform_0, window_bounds = array<i64: 8, 32>}, {transform_indices = @transform_1, window_bounds = array<i64: 8, 32>}, {transform_indices = @transform_2, window_bounds = array<i64: 8, 32>}, {pipeline_mode = #tpu.pipeline_mode<synchronous>, transform_indices = @transform_3, window_bounds = array<i64: 32, 512>}, {pipeline_mode = #tpu.pipeline_mode<synchronous>, transform_indices = @transform_4, window_bounds = array<i64: 1, 512>}, {pipeline_mode = #tpu.pipeline_mode<synchronous>, transform_indices = @transform_5, window_bounds = array<i64: 512, 256>}, {pipeline_mode = #tpu.pipeline_mode<synchronous>, transform_indices = @transform_6, window_bounds = array<i64: 1, 256>}, {pipeline_mode = #tpu.pipeline_mode<synchronous>, transform_indices = @transform_7, window_bounds = array<i64: 1, 256>}, {transform_indices = @transform_8, window_bounds = array<i64: 1, 1>}, {transform_indices = @transform_9, window_bounds = array<i64: 1, 8>}]} {
    %c0 = arith.constant 0 : index
    %c0_0 = arith.constant 0 : index
    %0 = vector.load %arg1[%c0, %c0_0] : memref<8x32xf32, #tpu.memory_space<vmem>>, vector<8x32xf32>
    %cst = arith.constant 5.000000e-01 : f32
    %1 = vector.broadcast %cst : f32 to vector<8x32xf32>
    %2 = arith.mulf %1, %0 : vector<8x32xf32>
    %3 = math.tanh %2 : vector<8x32xf32>
    %cst_1 = arith.constant 5.000000e-01 : f32
    %4 = vector.broadcast %cst_1 : f32 to vector<8x32xf32>
    %5 = arith.mulf %4, %3 : vector<8x32xf32>
    %cst_2 = arith.constant 5.000000e-01 : f32
    %6 = vector.broadcast %cst_2 : f32 to vector<8x32xf32>
    %7 = arith.addf %5, %6 : vector<8x32xf32>
    %c0_3 = arith.constant 0 : index
    %c0_4 = arith.constant 0 : index
    %8 = vector.load %arg2[%c0_3, %c0_4] : memref<8x32xf32, #tpu.memory_space<vmem>>, vector<8x32xf32>
    %cst_5 = arith.constant 5.000000e-01 : f32
    %9 = vector.broadcast %cst_5 : f32 to vector<8x32xf32>
    %10 = arith.mulf %9, %8 : vector<8x32xf32>
    %11 = math.tanh %10 : vector<8x32xf32>
    %cst_6 = arith.constant 5.000000e-01 : f32
    %12 = vector.broadcast %cst_6 : f32 to vector<8x32xf32>
    %13 = arith.mulf %12, %11 : vector<8x32xf32>
    %cst_7 = arith.constant 5.000000e-01 : f32
    %14 = vector.broadcast %cst_7 : f32 to vector<8x32xf32>
    %15 = arith.addf %13, %14 : vector<8x32xf32>
    %16 = arith.subf %7, %15 : vector<8x32xf32>
    %c0_8 = arith.constant 0 : index
    %c0_9 = arith.constant 0 : index
    %17 = vector.load %arg3[%c0_8, %c0_9] : memref<8x32xf32, #tpu.memory_space<vmem>>, vector<8x32xf32>
    %18 = arith.mulf %16, %17 : vector<8x32xf32>
    %19 = arith.truncf %18 : vector<8x32xf32> to vector<8x32xbf16>
    %c0_10 = arith.constant 0 : index
    %c0_11 = arith.constant 0 : index
    %20 = vector.load %arg4[%c0_10, %c0_11] : memref<32x512xbf16, #tpu.memory_space<vmem>>, vector<32x512xbf16>
    %cst_12 = arith.constant dense<0.000000e+00> : vector<8x512xf32>
    %21 = tpu.matmul %19, %20, %cst_12 {dimension_numbers = #tpu.dot_dimension_numbers<[1], [0], [0], [1], [0, 0, 1, 1], [], []>} : vector<8x32xbf16>, vector<32x512xbf16>, vector<8x512xf32> -> vector<8x512xf32>
    %c0_13 = arith.constant 0 : index
    %c0_14 = arith.constant 0 : index
    %22 = vector.load %arg5[%c0_13, %c0_14] : memref<1x512xf32, #tpu.memory_space<vmem>>, vector<1x512xf32>
    %23 = vector.broadcast %22 : vector<1x512xf32> to vector<8x512xf32>
    %24 = arith.addf %21, %23 : vector<8x512xf32>
    %cst_15 = arith.constant 5.000000e-01 : f32
    %25 = vector.broadcast %cst_15 : f32 to vector<8x512xf32>
    %26 = arith.mulf %25, %24 : vector<8x512xf32>
    %27 = math.tanh %26 : vector<8x512xf32>
    %cst_16 = arith.constant 5.000000e-01 : f32
    %28 = vector.broadcast %cst_16 : f32 to vector<8x512xf32>
    %29 = arith.mulf %28, %27 : vector<8x512xf32>
    %cst_17 = arith.constant 5.000000e-01 : f32
    %30 = vector.broadcast %cst_17 : f32 to vector<8x512xf32>
    %31 = arith.addf %29, %30 : vector<8x512xf32>
    %32 = arith.truncf %31 : vector<8x512xf32> to vector<8x512xbf16>
    %c0_18 = arith.constant 0 : index
    %c0_19 = arith.constant 0 : index
    %33 = vector.load %arg6[%c0_18, %c0_19] : memref<512x256xbf16, #tpu.memory_space<vmem>>, vector<512x256xbf16>
    %cst_20 = arith.constant dense<0.000000e+00> : vector<8x256xf32>
    %34 = tpu.matmul %32, %33, %cst_20 {dimension_numbers = #tpu.dot_dimension_numbers<[1], [0], [0], [1], [0, 0, 1, 1], [], []>} : vector<8x512xbf16>, vector<512x256xbf16>, vector<8x256xf32> -> vector<8x256xf32>
    %c0_21 = arith.constant 0 : index
    %c0_22 = arith.constant 0 : index
    %35 = vector.load %arg7[%c0_21, %c0_22] : memref<1x256xf32, #tpu.memory_space<vmem>>, vector<1x256xf32>
    %36 = vector.broadcast %35 : vector<1x256xf32> to vector<8x256xf32>
    %37 = arith.addf %34, %36 : vector<8x256xf32>
    %cst_23 = arith.constant 5.000000e-01 : f32
    %38 = vector.broadcast %cst_23 : f32 to vector<8x256xf32>
    %39 = arith.mulf %38, %37 : vector<8x256xf32>
    %40 = math.tanh %39 : vector<8x256xf32>
    %cst_24 = arith.constant 5.000000e-01 : f32
    %41 = vector.broadcast %cst_24 : f32 to vector<8x256xf32>
    %42 = arith.mulf %41, %40 : vector<8x256xf32>
    %cst_25 = arith.constant 5.000000e-01 : f32
    %43 = vector.broadcast %cst_25 : f32 to vector<8x256xf32>
    %44 = arith.addf %42, %43 : vector<8x256xf32>
    %c0_26 = arith.constant 0 : index
    %c0_27 = arith.constant 0 : index
    %45 = vector.load %arg8[%c0_26, %c0_27] : memref<1x256xbf16, #tpu.memory_space<vmem>>, vector<1x256xbf16>
    %46 = arith.truncf %44 : vector<8x256xf32> to vector<8x256xbf16>
    %cst_28 = arith.constant dense<0.000000e+00> : vector<1x8xf32>
    %47 = tpu.matmul %45, %46, %cst_28 {dimension_numbers = #tpu.dot_dimension_numbers<[1], [1], [0], [0], [0, 0, 1, 0], [], []>} : vector<1x256xbf16>, vector<8x256xbf16>, vector<1x8xf32> -> vector<1x8xf32>
    %c0_29 = arith.constant 0 : index
    %c0_30 = arith.constant 0 : index
    %48 = memref.load %arg9[%c0_29, %c0_30] : memref<1x1xf32, #tpu.memory_space<smem>>
    %49 = vector.broadcast %48 : f32 to vector<1x8xf32>
    %50 = arith.addf %47, %49 : vector<1x8xf32>
    %cst_31 = arith.constant 5.000000e-01 : f32
    %51 = vector.broadcast %cst_31 : f32 to vector<1x8xf32>
    %52 = arith.mulf %51, %50 : vector<1x8xf32>
    %53 = math.tanh %52 : vector<1x8xf32>
    %cst_32 = arith.constant 5.000000e-01 : f32
    %54 = vector.broadcast %cst_32 : f32 to vector<1x8xf32>
    %55 = arith.mulf %54, %53 : vector<1x8xf32>
    %cst_33 = arith.constant 5.000000e-01 : f32
    %56 = vector.broadcast %cst_33 : f32 to vector<1x8xf32>
    %57 = arith.addf %55, %56 : vector<1x8xf32>
    %c0_34 = arith.constant 0 : index
    %c0_35 = arith.constant 0 : index
    %58 = vector.load %arg10[%c0_34, %c0_35] : memref<1x8xf32, #tpu.memory_space<vmem>>, vector<1x8xf32>
    tpu.vector_store %arg10[%c0_34, %c0_35], %57 {strides = array<i32>} : memref<1x8xf32, #tpu.memory_space<vmem>>, vector<1x8xf32>,
    return
  }
  func.func @transform_0(%arg0: i32) -> (i32, i32) {
    %c0_i32 = arith.constant 0 : i32
    %c0_i32_0 = arith.constant 0 : i32
    return %arg0, %c0_i32 : i32, i32
  }
  func.func @transform_1(%arg0: i32) -> (i32, i32) {
    %c0_i32 = arith.constant 0 : i32
    %c0_i32_0 = arith.constant 0 : i32
    return %arg0, %c0_i32 : i32, i32
  }
  func.func @transform_2(%arg0: i32) -> (i32, i32) {
    %c0_i32 = arith.constant 0 : i32
    %c0_i32_0 = arith.constant 0 : i32
    return %arg0, %c0_i32 : i32, i32
  }
  func.func @transform_3(%arg0: i32) -> (i32, i32) {
    %c0_i32 = arith.constant 0 : i32
    %c0_i32_0 = arith.constant 0 : i32
    %c0_i32_1 = arith.constant 0 : i32
    return %c0_i32, %c0_i32_0 : i32, i32
  }
  func.func @transform_4(%arg0: i32) -> (i32, i32) {
    %c0_i32 = arith.constant 0 : i32
    %c0_i32_0 = arith.constant 0 : i32
    %c0_i32_1 = arith.constant 0 : i32
    return %c0_i32, %c0_i32_0 : i32, i32
  }
  func.func @transform_5(%arg0: i32) -> (i32, i32) {
    %c0_i32 = arith.constant 0 : i32
    %c0_i32_0 = arith.constant 0 : i32
    %c0_i32_1 = arith.constant 0 : i32
    return %c0_i32, %c0_i32_0 : i32, i32
  }
  func.func @transform_6(%arg0: i32) -> (i32, i32) {
    %c0_i32 = arith.constant 0 : i32
    %c0_i32_0 = arith.constant 0 : i32
    %c0_i32_1 = arith.constant 0 : i32
    return %c0_i32, %c0_i32_0 : i32, i32
  }
  func.func @transform_7(%arg0: i32) -> (i32, i32) {
    %c0_i32 = arith.constant 0 : i32
    %c0_i32_0 = arith.constant 0 : i32
    %c0_i32_1 = arith.constant 0 : i32
    return %c0_i32, %c0_i32_0 : i32, i32
  }
  func.func @transform_8(%arg0: i32) -> (i32, i32) {
    %c0_i32 = arith.constant 0 : i32
    %c0_i32_0 = arith.constant 0 : i32
    %c0_i32_1 = arith.constant 0 : i32
    return %c0_i32, %c0_i32_0 : i32, i32
  }
  func.func @transform_9(%arg0: i32) -> (i32, i32) {
    %c0_i32 = arith.constant 0 : i32
    %c0_i32_0 = arith.constant 0 : i32
    return %c0_i32, %arg0 : i32, i32
  }
}

</mosaic_0001>

<llo_original>
// kernel: ncdm_forward.1
$region0: #{ncdm_forward.1}
  #allocation0 [shape = 'u32[]', space=smem, size = 0x4, offset = 0x4, fixed_abs, tag = 'smem constant byte address 0x4 - core index']
  #allocation1 [shape = 'u32[72,128]{1,0:T(1,128)}', space=vmem, size = 0x9000, scoped, tag = 'internal scratch']
  #allocation2 [shape = 'f32[1,1]{1,0:T(1,128)S(6)}', space=smem, size = 0x200, scoped, tag = 'scoped memory for ncdm_forward.1']
  %s0 = inlined_call_operand.vmem [shape: f32[8,32], index: 0, kind: input, shape index: {}]
  %s1 = inlined_call_operand.vmem [shape: f32[8,32], index: 1, kind: input, shape index: {}]
  %s2 = inlined_call_operand.vmem [shape: f32[8,32], index: 2, kind: input, shape index: {}]
  %s3 = inlined_call_operand.vmem [shape: bf16[32,512], index: 3, kind: input, shape index: {}]
  %s4 = inlined_call_operand.vmem [shape: f32[1,512], index: 4, kind: input, shape index: {}]
  %s5 = inlined_call_operand.vmem [shape: bf16[512,256], index: 5, kind: input, shape index: {}]
  %s6 = inlined_call_operand.vmem [shape: f32[1,256], index: 6, kind: input, shape index: {}]
  %s7 = inlined_call_operand.vmem [shape: bf16[1,256], index: 7, kind: input, shape index: {}]
  %s8 = inlined_call_operand.<no memory space> [shape: f32[1,1], index: 8, kind: input, shape index: {}]
  %s9 = inlined_call_operand.hbm [shape: f32[1,8], index: 9, kind: output, shape index: {}]
  %s10 = sld [smem:[#allocation0]]
  $region46: #{ncdm_forward.1} parent=0
    _
  %s12 = ssub.s32 1, %s10
  %s13 = scalar_select 0, %s12, %s10
  %14 = sst [smem:[#allocation2]] %s8
  $region1: #{ncdm_forward.1} parent=0
    #allocation3 [shape = 'u8[512]{0}', space=vmem, size = 0x400, scoped, tag = 'output window, operand 0, single buffered']
    #allocation4 [shape = 's32[1]{0}', space=sflag, size = 0x4, scoped, tag = 'scoped memory for ncdm_forward.1']
    %15 = vsyncpa [#allocation4], 0
    // Predicated region
    $region2: #{ncdm_forward.1} parent=1 // pred_check
      _
    $region3: #{ncdm_forward.1} parent=1 // pred_check_branch
      %17 = sbr.rel (0) target = $region5
    $region4: #{ncdm_forward.1} parent=1 // pred_region
      _
    $region5: #{ncdm_forward.1} parent=1 // pred_fallthru
      _
    // Predicated region
    $region6: #{ncdm_forward.1} parent=1 // pred_check
      _
    $region7: #{ncdm_forward.1} parent=1 // pred_check_branch
      %19 = sbr.rel (0) target = $region9
    $region8: #{ncdm_forward.1} parent=1 // pred_region
      _
    $region9: #{ncdm_forward.1} parent=1 // pred_fallthru
      _
    // Predicated region
    $region10: #{ncdm_forward.1} parent=1 // pred_check
      _
    $region11: #{ncdm_forward.1} parent=1 // pred_check_branch
      %21 = sbr.rel (0) target = $region13
    $region12: #{ncdm_forward.1} parent=1 // pred_region
      _
    $region13: #{ncdm_forward.1} parent=1 // pred_fallthru
      _
    // Predicated region
    $region14: #{ncdm_forward.1} parent=1 // pred_check
      _
    $region15: #{ncdm_forward.1} parent=1 // pred_check_branch
      %23 = sbr.rel (0) target = $region17
    $region16: #{ncdm_forward.1} parent=1 // pred_region
      _
    $region17: #{ncdm_forward.1} parent=1 // pred_fallthru
      _
    // Predicated region
    $region18: #{ncdm_forward.1} parent=1 // pred_check
      _
    $region19: #{ncdm_forward.1} parent=1 // pred_check_branch
      %25 = sbr.rel (0) target = $region21
    $region20: #{ncdm_forward.1} parent=1 // pred_region
      _
    $region21: #{ncdm_forward.1} parent=1 // pred_fallthru
      _
    // Predicated region
    $region22: #{ncdm_forward.1} parent=1 // pred_check
      _
    $region23: #{ncdm_forward.1} parent=1 // pred_check_branch
      %27 = sbr.rel (0) target = $region25
    $region24: #{ncdm_forward.1} parent=1 // pred_region
      _
    $region25: #{ncdm_forward.1} parent=1 // pred_fallthru
      _
    // Predicated region
    $region26: #{ncdm_forward.1} parent=1 // pred_check
      _
    $region27: #{ncdm_forward.1} parent=1 // pred_check_branch
      %29 = sbr.rel (0) target = $region29
    $region28: #{ncdm_forward.1} parent=1 // pred_region
      _
    $region29: #{ncdm_forward.1} parent=1 // pred_fallthru
      _
    // Predicated region
    $region30: #{ncdm_forward.1} parent=1 // pred_check
      _
    $region31: #{ncdm_forward.1} parent=1 // pred_check_branch
      %31 = sbr.rel (0) target = $region33
    $region32: #{ncdm_forward.1} parent=1 // pred_region
      _
    $region33: #{ncdm_forward.1} parent=1 // pred_fallthru
      _
    // Predicated region
    $region34: #{ncdm_forward.1} parent=1 // pred_check
      _
    $region35: #{ncdm_forward.1} parent=1 // pred_check_branch
      %33 = sbr.rel (0) target = $region37
    $region36: #{ncdm_forward.1} parent=1 // pred_region
      _
    $region37: #{ncdm_forward.1} parent=1 // pred_fallthru
      _
    %v35 = vld [vmem:[%s0] sm:$0xff]
    %v36 = vmul.f32 %v35, 0.5
    %v37 = vtanh.pop %v36
    %v38 = vmul.f32 %v37, 0.5
    %v39 = vadd.f32 %v38, 0.5
    %v40 = vld [vmem:[%s1] sm:$0xff]
    %v41 = vmul.f32 %v40, 0.5
    %v42 = vtanh.pop %v41
    %v43 = vmul.f32 %v42, 0.5
    %v44 = vadd.f32 %v43, 0.5
    %v45 = vsub.f32 %v39, %v44
    %v46 = vld [vmem:[%s2] sm:$0xff]
    %v47 = vmul.f32 %v45, %v46
    %v48 = vpack.c.bf16 %v47, %v47
    %v49 = vld [vmem:[%s3] sm:$0xff]
    %v50 = vld [vmem:[%s3 + $0x8] sm:$0xff]
    %v51 = vld [vmem:[%s3 + $0x10] sm:$0xff]
    %v52 = vld [vmem:[%s3 + $0x18] sm:$0xff]
    %v53 = vld [vmem:[%s3 + $0x20] sm:$0xff]
    %v54 = vld [vmem:[%s3 + $0x28] sm:$0xff]
    %v55 = vld [vmem:[%s3 + $0x30] sm:$0xff]
    %v56 = vld [vmem:[%s3 + $0x38] sm:$0xff]
    %v57 = vld [vmem:[%s4] sm:$0xf]
    %v59 = vperm.slane %v57, 0
    %v60 = vperm.slane %v57, 1
    %v61 = vperm.slane %v57, 2
    %v62 = vperm.slane %v57, 3
    %v75 = vunpack.c.l.b16 %v49
    %v76 = vunpack.c.h.b16 %v49
    %v77 = vunpack.c.l.b16 %v50
    %v78 = vunpack.c.h.b16 %v50
    %v79 = vunpack.c.l.b16 %v51
    %v80 = vunpack.c.h.b16 %v51
    %v81 = vunpack.c.l.b16 %v52
    %v82 = vunpack.c.h.b16 %v52
    %v83 = vunpack.c.l.b16 %v53
    %v84 = vunpack.c.h.b16 %v53
    %v85 = vunpack.c.l.b16 %v54
    %v86 = vunpack.c.h.b16 %v54
    %v87 = vunpack.c.l.b16 %v55
    %v88 = vunpack.c.h.b16 %v55
    %v89 = vunpack.c.l.b16 %v56
    %v90 = vunpack.c.h.b16 %v56
    %v91 = vpack.c.b16 %v79, %v75
    %v92 = vpack.c.b16 %v80, %v76
    %v93 = vpack.c.b16 %v81, %v77
    %v94 = vpack.c.b16 %v82, %v78
    %v95 = vpack.c.b16 %v87, %v83
    %v96 = vpack.c.b16 %v88, %v84
    %v97 = vpack.c.b16 %v89, %v85
    %v98 = vpack.c.b16 %v90, %v86
    %vm107 = vcmask 261120
    %v109 = vsel %vm107, %v48, 0
    %111 = vmatpush.bf16.msra.mxu0 0
    %112 = vmatpush.bf16.msra.mxu0 0
    %113 = vmatpush.bf16.msra.mxu0 0
    %114 = vmatpush.bf16.msra.mxu0 0
    %115 = vmatpush.bf16.msra.mxu0 0
    %116 = vmatpush.bf16.msra.mxu0 0
    %117 = vmatpush.bf16.msra.mxu0 %v95
    %118 = vmatpush.bf16.msra.mxu0 %v91
    %119 = vmatmul.bf16.gmra.mxu0 %v109
    %v120 = vpop.f32.mrf.mxu0
    %v121 = vadd.f32 %v59, %v120
    %v122 = vpop.f32.mrf.mxu0
    %123 = vdwg.mxu0
    %124 = vmatpush.bf16.msra.mxu0 0
    %125 = vmatpush.bf16.msra.mxu0 0
    %126 = vmatpush.bf16.msra.mxu0 0
    %127 = vmatpush.bf16.msra.mxu0 0
    %128 = vmatpush.bf16.msra.mxu0 0
    %129 = vmatpush.bf16.msra.mxu0 0
    %130 = vmatpush.bf16.msra.mxu0 %v96
    %131 = vmatpush.bf16.msra.mxu0 %v92
    %132 = vmatmul.bf16.gmra.mxu0 %v109
    %v133 = vpop.f32.mrf.mxu0
    %v134 = vadd.f32 %v60, %v133
    %v135 = vpop.f32.mrf.mxu0
    %136 = vdwg.mxu0
    %137 = vmatpush.bf16.msra.mxu0 0
    %138 = vmatpush.bf16.msra.mxu0 0
    %139 = vmatpush.bf16.msra.mxu0 0
    %140 = vmatpush.bf16.msra.mxu0 0
    %141 = vmatpush.bf16.msra.mxu0 0
    %142 = vmatpush.bf16.msra.mxu0 0
    %143 = vmatpush.bf16.msra.mxu0 %v97
    %144 = vmatpush.bf16.msra.mxu0 %v93
    %145 = vmatmul.bf16.gmra.mxu0 %v109
    %v146 = vpop.f32.mrf.mxu0
    %v147 = vadd.f32 %v61, %v146
    %v148 = vpop.f32.mrf.mxu0
    %149 = vdwg.mxu0
    %150 = vmatpush.bf16.msra.mxu0 0
    %151 = vmatpush.bf16.msra.mxu0 0
    %152 = vmatpush.bf16.msra.mxu0 0
    %153 = vmatpush.bf16.msra.mxu0 0
    %154 = vmatpush.bf16.msra.mxu0 0
    %155 = vmatpush.bf16.msra.mxu0 0
    %156 = vmatpush.bf16.msra.mxu0 %v98
    %157 = vmatpush.bf16.msra.mxu0 %v94
    %158 = vmatmul.bf16.gmra.mxu0 %v109
    %v159 = vpop.f32.mrf.mxu0
    %v160 = vadd.f32 %v62, %v159
    %v161 = vpop.f32.mrf.mxu0
    %162 = vdwg.mxu0
    %v163 = vmul.f32 %v121, 0.5
    %v164 = vmul.f32 %v134, 0.5
    %v165 = vmul.f32 %v147, 0.5
    %v166 = vmul.f32 %v160, 0.5
    %v167 = vtanh.pop %v163
    %v168 = vtanh.pop %v164
    %v169 = vtanh.pop %v165
    %v170 = vtanh.pop %v166
    %v171 = vmul.f32 %v167, 0.5
    %v172 = vmul.f32 %v168, 0.5
    %v173 = vmul.f32 %v169, 0.5
    %v174 = vmul.f32 %v170, 0.5
    %v175 = vadd.f32 %v171, 0.5
    %v176 = vadd.f32 %v172, 0.5
    %v177 = vadd.f32 %v173, 0.5
    %v178 = vadd.f32 %v174, 0.5
    %v179 = vpack.c.bf16 %v175, %v175
    %v180 = vpack.c.bf16 %v176, %v176
    %v181 = vpack.c.bf16 %v177, %v177
    %v182 = vpack.c.bf16 %v178, %v178
    %v183 = vld [vmem:[%s5] sm:$0xff]
    %v184 = vld [vmem:[%s5 + $0x8] sm:$0xff]
    %v185 = vld [vmem:[%s5 + $0x10] sm:$0xff]
    %v186 = vld [vmem:[%s5 + $0x18] sm:$0xff]
    %v187 = vld [vmem:[%s5 + $0x20] sm:$0xff]
    %v188 = vld [vmem:[%s5 + $0x28] sm:$0xff]
    %v189 = vld [vmem:[%s5 + $0x30] sm:$0xff]
    %v190 = vld [vmem:[%s5 + $0x38] sm:$0xff]
    %v191 = vld [vmem:[%s5 + $0x40] sm:$0xff]
    %v192 = vld [vmem:[%s5 + $0x48] sm:$0xff]
    %v193 = vld [vmem:[%s5 + $0x50] sm:$0xff]
    %v194 = vld [vmem:[%s5 + $0x58] sm:$0xff]
    %v195 = vld [vmem:[%s5 + $0x60] sm:$0xff]
    %v196 = vld [vmem:[%s5 + $0x68] sm:$0xff]
    %v197 = vld [vmem:[%s5 + $0x70] sm:$0xff]
    %v198 = vld [vmem:[%s5 + $0x78] sm:$0xff]
    %v199 = vld [vmem:[%s5 + $0x80] sm:$0xff]
    %v200 = vld [vmem:[%s5 + $0x88] sm:$0xff]
    %v201 = vld [vmem:[%s5 + $0x90] sm:$0xff]
    %v202 = vld [vmem:[%s5 + $0x98] sm:$0xff]
    %v203 = vld [vmem:[%s5 + $0xa0] sm:$0xff]
    %v204 = vld [vmem:[%s5 + $0xa8] sm:$0xff]
    %v205 = vld [vmem:[%s5 + $0xb0] sm:$0xff]
    %v206 = vld [vmem:[%s5 + $0xb8] sm:$0xff]
    %v207 = vld [vmem:[%s5 + $0xc0] sm:$0xff]
    %v208 = vld [vmem:[%s5 + $0xc8] sm:$0xff]
    %v209 = vld [vmem:[%s5 + $0xd0] sm:$0xff]
    %v210 = vld [vmem:[%s5 + $0xd8] sm:$0xff]
    %v211 = vld [vmem:[%s5 + $0xe0] sm:$0xff]
    %v212 = vld [vmem:[%s5 + $0xe8] sm:$0xff]
    %v213 = vld [vmem:[%s5 + $0xf0] sm:$0xff]
    %v214 = vld [vmem:[%s5 + $0xf8] sm:$0xff]
    %v215 = vld [vmem:[%s5 + $0x100] sm:$0xff]
    %v216 = vld [vmem:[%s5 + $0x108] sm:$0xff]
    %v217 = vld [vmem:[%s5 + $0x110] sm:$0xff]
    %v218 = vld [vmem:[%s5 + $0x118] sm:$0xff]
    %v219 = vld [vmem:[%s5 + $0x120] sm:$0xff]
    %v220 = vld [vmem:[%s5 + $0x128] sm:$0xff]
    %v221 = vld [vmem:[%s5 + $0x130] sm:$0xff]
    %v222 = vld [vmem:[%s5 + $0x138] sm:$0xff]
    %v223 = vld [vmem:[%s5 + $0x140] sm:$0xff]
    %v224 = vld [vmem:[%s5 + $0x148] sm:$0xff]
    %v225 = vld [vmem:[%s5 + $0x150] sm:$0xff]
    %v226 = vld [vmem:[%s5 + $0x158] sm:$0xff]
    %v227 = vld [vmem:[%s5 + $0x160] sm:$0xff]
    %v228 = vld [vmem:[%s5 + $0x168] sm:$0xff]
    %v229 = vld [vmem:[%s5 + $0x170] sm:$0xff]
    %v230 = vld [vmem:[%s5 + $0x178] sm:$0xff]
    %v231 = vld [vmem:[%s5 + $0x180] sm:$0xff]
    %v232 = vld [vmem:[%s5 + $0x188] sm:$0xff]
    %v233 = vld [vmem:[%s5 + $0x190] sm:$0xff]
    %v234 = vld [vmem:[%s5 + $0x198] sm:$0xff]
    %v235 = vld [vmem:[%s5 + $0x1a0] sm:$0xff]
    %v236 = vld [vmem:[%s5 + $0x1a8] sm:$0xff]
    %v237 = vld [vmem:[%s5 + $0x1b0] sm:$0xff]
    %v238 = vld [vmem:[%s5 + $0x1b8] sm:$0xff]
    %v239 = vld [vmem:[%s5 + $0x1c0] sm:$0xff]
    %v240 = vld [vmem:[%s5 + $0x1c8] sm:$0xff]
    %v241 = vld [vmem:[%s5 + $0x1d0] sm:$0xff]
    %v242 = vld [vmem:[%s5 + $0x1d8] sm:$0xff]
    %v243 = vld [vmem:[%s5 + $0x1e0] sm:$0xff]
    %v244 = vld [vmem:[%s5 + $0x1e8] sm:$0xff]
    %v245 = vld [vmem:[%s5 + $0x1f0] sm:$0xff]
    %v246 = vld [vmem:[%s5 + $0x1f8] sm:$0xff]
    %v247 = vld [vmem:[%s6] sm:$0x3]
    %v249 = vperm.slane %v247, 0
    %v250 = vperm.slane %v247, 1
    %v317 = vunpack.c.l.b16 %v183
    %v318 = vunpack.c.h.b16 %v183
    %v319 = vunpack.c.l.b16 %v184
    %v320 = vunpack.c.h.b16 %v184
    %v321 = vunpack.c.l.b16 %v185
    %v322 = vunpack.c.h.b16 %v185
    %v323 = vunpack.c.l.b16 %v186
    %v324 = vunpack.c.h.b16 %v186
    %v325 = vunpack.c.l.b16 %v187
    %v326 = vunpack.c.h.b16 %v187
    %v327 = vunpack.c.l.b16 %v188
    %v328 = vunpack.c.h.b16 %v188
    %v329 = vunpack.c.l.b16 %v189
    %v330 = vunpack.c.h.b16 %v189
    %v331 = vunpack.c.l.b16 %v190
    %v332 = vunpack.c.h.b16 %v190
    %v333 = vunpack.c.l.b16 %v191
    %v334 = vunpack.c.h.b16 %v191
    %v335 = vunpack.c.l.b16 %v192
    %v336 = vunpack.c.h.b16 %v192
    %v337 = vunpack.c.l.b16 %v193
    %v338 = vunpack.c.h.b16 %v193
    %v339 = vunpack.c.l.b16 %v194
    %v340 = vunpack.c.h.b16 %v194
    %v341 = vunpack.c.l.b16 %v195
    %v342 = vunpack.c.h.b16 %v195
    %v343 = vunpack.c.l.b16 %v196
    %v344 = vunpack.c.h.b16 %v196
    %v345 = vunpack.c.l.b16 %v197
    %v346 = vunpack.c.h.b16 %v197
    %v347 = vunpack.c.l.b16 %v198
    %v348 = vunpack.c.h.b16 %v198
    %v349 = vunpack.c.l.b16 %v199
    %v350 = vunpack.c.h.b16 %v199
    %v351 = vunpack.c.l.b16 %v200
    %v352 = vunpack.c.h.b16 %v200
    %v353 = vunpack.c.l.b16 %v201
    %v354 = vunpack.c.h.b16 %v201
    %v355 = vunpack.c.l.b16 %v202
    %v356 = vunpack.c.h.b16 %v202
    %v357 = vunpack.c.l.b16 %v203
    %v358 = vunpack.c.h.b16 %v203
    %v359 = vunpack.c.l.b16 %v204
    %v360 = vunpack.c.h.b16 %v204
    %v361 = vunpack.c.l.b16 %v205
    %v362 = vunpack.c.h.b16 %v205
    %v363 = vunpack.c.l.b16 %v206
    %v364 = vunpack.c.h.b16 %v206
    %v365 = vunpack.c.l.b16 %v207
    %v366 = vunpack.c.h.b16 %v207
    %v367 = vunpack.c.l.b16 %v208
    %v368 = vunpack.c.h.b16 %v208
    %v369 = vunpack.c.l.b16 %v209
    %v370 = vunpack.c.h.b16 %v209
    %v371 = vunpack.c.l.b16 %v210
    %v372 = vunpack.c.h.b16 %v210
    %v373 = vunpack.c.l.b16 %v211
    %v374 = vunpack.c.h.b16 %v211
    %v375 = vunpack.c.l.b16 %v212
    %v376 = vunpack.c.h.b16 %v212
    %v377 = vunpack.c.l.b16 %v213
    %v378 = vunpack.c.h.b16 %v213
    %v379 = vunpack.c.l.b16 %v214
    %v380 = vunpack.c.h.b16 %v214
    %v381 = vunpack.c.l.b16 %v215
    %v382 = vunpack.c.h.b16 %v215
    %v383 = vunpack.c.l.b16 %v216
    %v384 = vunpack.c.h.b16 %v216
    %v385 = vunpack.c.l.b16 %v217
    %v386 = vunpack.c.h.b16 %v217
    %v387 = vunpack.c.l.b16 %v218
    %v388 = vunpack.c.h.b16 %v218
    %v389 = vunpack.c.l.b16 %v219
    %v390 = vunpack.c.h.b16 %v219
    %v391 = vunpack.c.l.b16 %v220
    %v392 = vunpack.c.h.b16 %v220
    %v393 = vunpack.c.l.b16 %v221
    %v394 = vunpack.c.h.b16 %v221
    %v395 = vunpack.c.l.b16 %v222
    %v396 = vunpack.c.h.b16 %v222
    %v397 = vunpack.c.l.b16 %v223
    %v398 = vunpack.c.h.b16 %v223
    %v399 = vunpack.c.l.b16 %v224
    %v400 = vunpack.c.h.b16 %v224
    %v401 = vunpack.c.l.b16 %v225
    %v402 = vunpack.c.h.b16 %v225
    %v403 = vunpack.c.l.b16 %v226
    %v404 = vunpack.c.h.b16 %v226
    %v405 = vunpack.c.l.b16 %v227
    %v406 = vunpack.c.h.b16 %v227
    %v407 = vunpack.c.l.b16 %v228
    %v408 = vunpack.c.h.b16 %v228
    %v409 = vunpack.c.l.b16 %v229
    %v410 = vunpack.c.h.b16 %v229
    %v411 = vunpack.c.l.b16 %v230
    %v412 = vunpack.c.h.b16 %v230
    %v413 = vunpack.c.l.b16 %v231
    %v414 = vunpack.c.h.b16 %v231
    %v415 = vunpack.c.l.b16 %v232
    %v416 = vunpack.c.h.b16 %v232
    %v417 = vunpack.c.l.b16 %v233
    %v418 = vunpack.c.h.b16 %v233
    %v419 = vunpack.c.l.b16 %v234
    %v420 = vunpack.c.h.b16 %v234
    %v421 = vunpack.c.l.b16 %v235
    %v422 = vunpack.c.h.b16 %v235
    %v423 = vunpack.c.l.b16 %v236
    %v424 = vunpack.c.h.b16 %v236
    %v425 = vunpack.c.l.b16 %v237
    %v426 = vunpack.c.h.b16 %v237
    %v427 = vunpack.c.l.b16 %v238
    %v428 = vunpack.c.h.b16 %v238
    %v429 = vunpack.c.l.b16 %v239
    %v430 = vunpack.c.h.b16 %v239
    %v431 = vunpack.c.l.b16 %v240
    %v432 = vunpack.c.h.b16 %v240
    %v433 = vunpack.c.l.b16 %v241
    %v434 = vunpack.c.h.b16 %v241
    %v435 = vunpack.c.l.b16 %v242
    %v436 = vunpack.c.h.b16 %v242
    %v437 = vunpack.c.l.b16 %v243
    %v438 = vunpack.c.h.b16 %v243
    %v439 = vunpack.c.l.b16 %v244
    %v440 = vunpack.c.h.b16 %v244
    %v441 = vunpack.c.l.b16 %v245
    %v442 = vunpack.c.h.b16 %v245
    %v443 = vunpack.c.l.b16 %v246
    %v444 = vunpack.c.h.b16 %v246
    %v445 = vpack.c.b16 %v319, %v317
    %v446 = vpack.c.b16 %v320, %v318
    %v447 = vpack.c.b16 %v323, %v321
    %v448 = vpack.c.b16 %v324, %v322
    %v449 = vpack.c.b16 %v327, %v325
    %v450 = vpack.c.b16 %v328, %v326
    %v451 = vpack.c.b16 %v331, %v329
    %v452 = vpack.c.b16 %v332, %v330
    %v453 = vpack.c.b16 %v335, %v333
    %v454 = vpack.c.b16 %v336, %v334
    %v455 = vpack.c.b16 %v339, %v337
    %v456 = vpack.c.b16 %v340, %v338
    %v457 = vpack.c.b16 %v343, %v341
    %v458 = vpack.c.b16 %v344, %v342
    %v459 = vpack.c.b16 %v347, %v345
    %v460 = vpack.c.b16 %v348, %v346
    %v461 = vpack.c.b16 %v351, %v349
    %v462 = vpack.c.b16 %v352, %v350
    %v463 = vpack.c.b16 %v355, %v353
    %v464 = vpack.c.b16 %v356, %v354
    %v465 = vpack.c.b16 %v359, %v357
    %v466 = vpack.c.b16 %v360, %v358
    %v467 = vpack.c.b16 %v363, %v361
    %v468 = vpack.c.b16 %v364, %v362
    %v469 = vpack.c.b16 %v367, %v365
    %v470 = vpack.c.b16 %v368, %v366
    %v471 = vpack.c.b16 %v371, %v369
    %v472 = vpack.c.b16 %v372, %v370
    %v473 = vpack.c.b16 %v375, %v373
    %v474 = vpack.c.b16 %v376, %v374
    %v475 = vpack.c.b16 %v379, %v377
    %v476 = vpack.c.b16 %v380, %v378
    %v477 = vpack.c.b16 %v383, %v381
    %v478 = vpack.c.b16 %v384, %v382
    %v479 = vpack.c.b16 %v387, %v385
    %v480 = vpack.c.b16 %v388, %v386
    %v481 = vpack.c.b16 %v391, %v389
    %v482 = vpack.c.b16 %v392, %v390
    %v483 = vpack.c.b16 %v395, %v393
    %v484 = vpack.c.b16 %v396, %v394
    %v485 = vpack.c.b16 %v399, %v397
    %v486 = vpack.c.b16 %v400, %v398
    %v487 = vpack.c.b16 %v403, %v401
    %v488 = vpack.c.b16 %v404, %v402
    %v489 = vpack.c.b16 %v407, %v405
    %v490 = vpack.c.b16 %v408, %v406
    %v491 = vpack.c.b16 %v411, %v409
    %v492 = vpack.c.b16 %v412, %v410
    %v493 = vpack.c.b16 %v415, %v413
    %v494 = vpack.c.b16 %v416, %v414
    %v495 = vpack.c.b16 %v419, %v417
    %v496 = vpack.c.b16 %v420, %v418
    %v497 = vpack.c.b16 %v423, %v421
    %v498 = vpack.c.b16 %v424, %v422
    %v499 = vpack.c.b16 %v427, %v425
    %v500 = vpack.c.b16 %v428, %v426
    %v501 = vpack.c.b16 %v431, %v429
    %v502 = vpack.c.b16 %v432, %v430
    %v503 = vpack.c.b16 %v435, %v433
    %v504 = vpack.c.b16 %v436, %v434
    %v505 = vpack.c.b16 %v439, %v437
    %v506 = vpack.c.b16 %v440, %v438
    %v507 = vpack.c.b16 %v443, %v441
    %v508 = vpack.c.b16 %v444, %v442
    %573 = vmatpush.bf16.msra.mxu0 %v459
    %574 = vmatpush.bf16.msra.mxu0 %v457
    %575 = vmatpush.bf16.msra.mxu0 %v455
    %576 = vmatpush.bf16.msra.mxu0 %v453
    %577 = vmatpush.bf16.msra.mxu0 %v451
    %578 = vmatpush.bf16.msra.mxu0 %v449
    %579 = vmatpush.bf16.msra.mxu0 %v447
    %580 = vmatpush.bf16.msra.mxu0 %v445
    %581 = vmatmul.bf16.gmra.mxu0 %v179
    %v582 = vpop.f32.mrf.mxu0
    %v583 = vadd.f32 %v249, %v582
    %v584 = vpop.f32.mrf.mxu0
    %585 = vdwg.mxu0
    %586 = vmatpush.bf16.msra.mxu0 %v475
    %587 = vmatpush.bf16.msra.mxu0 %v473
    %588 = vmatpush.bf16.msra.mxu0 %v471
    %589 = vmatpush.bf16.msra.mxu0 %v469
    %590 = vmatpush.bf16.msra.mxu0 %v467
    %591 = vmatpush.bf16.msra.mxu0 %v465
    %592 = vmatpush.bf16.msra.mxu0 %v463
    %593 = vmatpush.bf16.msra.mxu0 %v461
    %594 = vmatmul.bf16.gmra.mxu0 %v180
    %v595 = vpop.f32.mrf.mxu0
    %v596 = vadd.f32 %v583, %v595
    %v597 = vpop.f32.mrf.mxu0
    %598 = vdwg.mxu0
    %599 = vmatpush.bf16.msra.mxu0 %v491
    %600 = vmatpush.bf16.msra.mxu0 %v489
    %601 = vmatpush.bf16.msra.mxu0 %v487
    %602 = vmatpush.bf16.msra.mxu0 %v485
    %603 = vmatpush.bf16.msra.mxu0 %v483
    %604 = vmatpush.bf16.msra.mxu0 %v481
    %605 = vmatpush.bf16.msra.mxu0 %v479
    %606 = vmatpush.bf16.msra.mxu0 %v477
    %607 = vmatmul.bf16.gmra.mxu0 %v181
    %v608 = vpop.f32.mrf.mxu0
    %v609 = vadd.f32 %v596, %v608
    %v610 = vpop.f32.mrf.mxu0
    %611 = vdwg.mxu0
    %612 = vmatpush.bf16.msra.mxu0 %v507
    %613 = vmatpush.bf16.msra.mxu0 %v505
    %614 = vmatpush.bf16.msra.mxu0 %v503
    %615 = vmatpush.bf16.msra.mxu0 %v501
    %616 = vmatpush.bf16.msra.mxu0 %v499
    %617 = vmatpush.bf16.msra.mxu0 %v497
    %618 = vmatpush.bf16.msra.mxu0 %v495
    %619 = vmatpush.bf16.msra.mxu0 %v493
    %620 = vmatmul.bf16.gmra.mxu0 %v182
    %v621 = vpop.f32.mrf.mxu0
    %v622 = vadd.f32 %v609, %v621
    %v623 = vpop.f32.mrf.mxu0
    %624 = vdwg.mxu0
    %625 = vmatpush.bf16.msra.mxu0 %v460
    %626 = vmatpush.bf16.msra.mxu0 %v458
    %627 = vmatpush.bf16.msra.mxu0 %v456
    %628 = vmatpush.bf16.msra.mxu0 %v454
    %629 = vmatpush.bf16.msra.mxu0 %v452
    %630 = vmatpush.bf16.msra.mxu0 %v450
    %631 = vmatpush.bf16.msra.mxu0 %v448
    %632 = vmatpush.bf16.msra.mxu0 %v446
    %633 = vmatmul.bf16.gmra.mxu0 %v179
    %v634 = vpop.f32.mrf.mxu0
    %v635 = vadd.f32 %v250, %v634
    %v636 = vpop.f32.mrf.mxu0
    %637 = vdwg.mxu0
    %638 = vmatpush.bf16.msra.mxu0 %v476
    %639 = vmatpush.bf16.msra.mxu0 %v474
    %640 = vmatpush.bf16.msra.mxu0 %v472
    %641 = vmatpush.bf16.msra.mxu0 %v470
    %642 = vmatpush.bf16.msra.mxu0 %v468
    %643 = vmatpush.bf16.msra.mxu0 %v466
    %644 = vmatpush.bf16.msra.mxu0 %v464
    %645 = vmatpush.bf16.msra.mxu0 %v462
    %646 = vmatmul.bf16.gmra.mxu0 %v180
    %v647 = vpop.f32.mrf.mxu0
    %v648 = vadd.f32 %v635, %v647
    %v649 = vpop.f32.mrf.mxu0
    %650 = vdwg.mxu0
    %651 = vmatpush.bf16.msra.mxu0 %v492
    %652 = vmatpush.bf16.msra.mxu0 %v490
    %653 = vmatpush.bf16.msra.mxu0 %v488
    %654 = vmatpush.bf16.msra.mxu0 %v486
    %655 = vmatpush.bf16.msra.mxu0 %v484
    %656 = vmatpush.bf16.msra.mxu0 %v482
    %657 = vmatpush.bf16.msra.mxu0 %v480
    %658 = vmatpush.bf16.msra.mxu0 %v478
    %659 = vmatmul.bf16.gmra.mxu0 %v181
    %v660 = vpop.f32.mrf.mxu0
    %v661 = vadd.f32 %v648, %v660
    %v662 = vpop.f32.mrf.mxu0
    %663 = vdwg.mxu0
    %664 = vmatpush.bf16.msra.mxu0 %v508
    %665 = vmatpush.bf16.msra.mxu0 %v506
    %666 = vmatpush.bf16.msra.mxu0 %v504
    %667 = vmatpush.bf16.msra.mxu0 %v502
    %668 = vmatpush.bf16.msra.mxu0 %v500
    %669 = vmatpush.bf16.msra.mxu0 %v498
    %670 = vmatpush.bf16.msra.mxu0 %v496
    %671 = vmatpush.bf16.msra.mxu0 %v494
    %672 = vmatmul.bf16.gmra.mxu0 %v182
    %v673 = vpop.f32.mrf.mxu0
    %v674 = vadd.f32 %v661, %v673
    %v675 = vpop.f32.mrf.mxu0
    %676 = vdwg.mxu0
    %v677 = vmul.f32 %v622, 0.5
    %v678 = vmul.f32 %v674, 0.5
    %v679 = vtanh.pop %v677
    %v680 = vtanh.pop %v678
    %v681 = vmul.f32 %v679, 0.5
    %v682 = vmul.f32 %v680, 0.5
    %v683 = vadd.f32 %v681, 0.5
    %v684 = vadd.f32 %v682, 0.5
    %v685 = vld [vmem:[%s7] sm:$0x3]
    %v686 = vpack.c.bf16 %v683, %v683
    %v687 = vpack.c.bf16 %v684, %v684
    %s688 = sld [smem:[#allocation2]]
    %v689 = vstv %s688
    %691 = vst [vmem:[#allocation1] ss:$9 sm:$0xff] %v685
    %v692 = vld [vmem:[#allocation1] sm:$0xff]
    %v693 = vld [vmem:[#allocation1 + $0x9] sm:$0xff]
    %696 = vmatpush.bf16.xpose.msra.mxu0 0
    %697 = vmatpush.bf16.xpose.msra.mxu0 0
    %698 = vmatpush.bf16.xpose.msra.mxu0 0
    %699 = vmatpush.bf16.xpose.msra.mxu0 0
    %700 = vmatpush.bf16.xpose.msra.mxu0 0
    %701 = vmatpush.bf16.xpose.msra.mxu0 0
    %702 = vmatpush.bf16.xpose.msra.mxu0 0
    %703 = vmatpush.bf16.xpose.msra.mxu0 %v686
    %704 = vmatmul.bf16.gmra.mxu0 %v692
    %v705 = vpop.f32.mrf.mxu0
    %v706 = vadd.f32 %v689, %v705
    %v707 = vpop.f32.mrf.mxu0
    %708 = vdwg.mxu0
    %709 = vmatpush.bf16.xpose.msra.mxu0 0
    %710 = vmatpush.bf16.xpose.msra.mxu0 0
    %711 = vmatpush.bf16.xpose.msra.mxu0 0
    %712 = vmatpush.bf16.xpose.msra.mxu0 0
    %713 = vmatpush.bf16.xpose.msra.mxu0 0
    %714 = vmatpush.bf16.xpose.msra.mxu0 0
    %715 = vmatpush.bf16.xpose.msra.mxu0 0
    %716 = vmatpush.bf16.xpose.msra.mxu0 %v687
    %717 = vmatmul.bf16.gmra.mxu0 %v693
    %v718 = vpop.f32.mrf.mxu0
    %v719 = vadd.f32 %v706, %v718
    %v720 = vpop.f32.mrf.mxu0
    %721 = vdwg.mxu0
    %v722 = vmul.f32 %v719, 0.5
    %v723 = vtanh.pop %v722
    %v724 = vmul.f32 %v723, 0.5
    %v725 = vadd.f32 %v724, 0.5
    %vm726 = vcmask 57344
    %727 = vst.msk [vmem:[#allocation3] sm:$0x1] %vm726, %v725
    // Predicated region
    $region38: #{ncdm_forward.1} parent=1 // pred_check
      _
    $region39: #{ncdm_forward.1} parent=1 // pred_check_branch
      %729 = sbr.rel (0) target = $region41
    $region40: #{ncdm_forward.1} parent=1 // pred_region
      %731 = vsyncadd [#allocation4], 0
      %s733 = sshll.u32 [#allocation3], 4
      %s734 = int_to_ptr.vmem [resolvable:$true] %s733
      %s735 = sshll.u32 %s9, 4
      %s736 = int_to_ptr.hbm [resolvable:$true] %s735
      %738 = dma.vmem_to_hbm [thread:$0]  %s734, 16, %s736, [#allocation4]
    $region41: #{ncdm_forward.1} parent=1 // pred_fallthru
      _
    // Predicated region
    $region42: #{ncdm_forward.1} parent=1 // pred_check
      _
    $region43: #{ncdm_forward.1} parent=1 // pred_check_branch
      %740 = sbr.rel (0) target = $region45
    $region44: #{ncdm_forward.1} parent=1 // pred_region
      %742 = dma.done [#allocation4], 16
    $region45: #{ncdm_forward.1} parent=1 // pred_fallthru
      _
    %743 = vsyncpa [#allocation4], 1

</llo_original>
